<compile_context>
chip_gen: v6e
topology: v6e:2x2x1
jax: 0.10.0
libtpu: 0.0.40
codegen_flags: <defaults>
</compile_context>

<pallas_src>
import jax
import jax.numpy as jnp
from jax.experimental import pallas as pl
from jax.experimental.pallas import tpu as pltpu

EPS = 1e-5  # nn.LayerNorm default


def _round_up(a: int, b: int) -> int:
    return (a + b - 1) // b * b


def _round_down(a: int, b: int) -> int:
    return (a // b) * b


def _vmem_budget_bytes() -> int:
    """Generation-aware VMEM budget used for tile sizing and vmem_limit_bytes."""
    cap = 0
    try:
        cap = int(pltpu.get_tpu_info().vmem_capacity_bytes)
    except Exception:
        cap = 0
    if cap <= 0:
        kind = ""
        try:
            kind = jax.devices()[0].device_kind.lower()
        except Exception:
            pass
        # 128 MiB on v5e/v6e; assume the conservative 64 MiB per-TC otherwise.
        cap = (128 << 20) if ("v5" in kind or "v6" in kind) else (64 << 20)
    if cap <= (64 << 20):
        # v7x-class: 64 MiB per TC is the WHOLE VMEM — leave headroom for
        # Mosaic internal scratch / semaphores.
        return min(48 << 20, int(cap * 0.75))
    # v5e/v6e-class: 128 MiB — allow large row tiles and a fully resident W.
    return min(100 << 20, int(cap * 0.78))


def prenorm_linear_kernel(x_ref, w_ref, b_ref, o_ref, xn_ref):
    # x_ref : (rm, D)   row tile (full D per row: LN needs the whole row)
    # w_ref : (D, tn)   folded weight  (gamma[:, None] * W), compute dtype
    # b_ref : (1, tn)   folded bias    (beta @ W + wb), f32
    # o_ref : (rm, tn)  output tile
    # xn_ref: (rm, D)   VMEM scratch caching normalized rows across column tiles
    @pl.when(pl.program_id(1) == 0)
    def _():
        x = x_ref[...].astype(jnp.float32)
        mean = jnp.mean(x, axis=-1, keepdims=True)
        mean_sq = jnp.mean(x * x, axis=-1, keepdims=True)
        var = mean_sq - mean * mean               # biased variance (torch LN)
        inv = jax.lax.rsqrt(var + EPS)
        xn_ref[...] = ((x - mean) * inv).astype(xn_ref.dtype)

    acc = jnp.dot(xn_ref[...], w_ref[...], preferred_element_type=jnp.float32)
    o_ref[...] = (acc + b_ref[...]).astype(o_ref.dtype)


def prenorm_linear(x, gamma, beta, w, wb, *, rm=None, tn=None,
                   compute_dtype=jnp.bfloat16):
    """x: (B, N, D) -> (B, N, Dout).  LayerNorm(D) then Linear: (xn*g+b) @ W + wb."""
    B, N, D = x.shape
    Dout = w.shape[1]
    rows = B * N

    xs = jnp.dtype(x.dtype).itemsize
    os_ = jnp.dtype(x.dtype).itemsize
    cd = jnp.dtype(compute_dtype).itemsize

    budget = _vmem_budget_bytes()

    # Fold the LayerNorm affine into the linear:
    #   (xn * g + b) @ W + wb == xn @ (g[:, None] * W) + (b @ W + wb)
    # Exact in f32; applied at compute_dtype precision inside the matmul.
    w32 = w.astype(jnp.float32)
    w_f = (gamma.astype(jnp.float32)[:, None] * w32).astype(compute_dtype)
    b_f = (beta.astype(jnp.float32) @ w32 + wb.astype(jnp.float32))
    b_f = b_f.reshape(1, Dout).astype(jnp.float32)

    # --- column tile / weight residency -------------------------------------
    if tn is None:
        tn = Dout if (2 * D * Dout * cd <= int(budget * 0.4)) else 512
    if tn >= Dout:
        tn = Dout                                  # full width: always legal
    else:
        tn = max(128, _round_down(tn, 128))        # lane-aligned column tile
        if tn >= Dout:
            tn = Dout

    # --- row tile, solved against the VMEM budget ----------------------------
    if rm is None:
        rm = 512 if budget <= (48 << 20) else 1024
    per_row = (2 * D * xs          # x tile, double-buffered
               + 2 * tn * os_      # out tile, double-buffered
               + D * cd            # xn scratch
               + 3 * D * 4)        # f32 LN temporaries headroom
    fixed = 2 * D * tn * cd + 2 * _round_up(tn, 128) * 4 + (2 << 20)
    rm_fit = max(8, _round_down(max(budget - fixed, 0) // max(per_row, 1), 8))
    rm = max(8, min(_round_up(rm, 8), rm_fit, _round_up(rows, 8)))

    grid = (pl.cdiv(rows, rm), pl.cdiv(Dout, tn))

    est = (2 * rm * D * xs + 2 * rm * tn * os_ + 2 * D * tn * cd
           + 2 * _round_up(tn, 128) * 4 + rm * D * cd + 3 * rm * D * 4
           + (2 << 20))
    vmem_limit = int(min(max(est, 32 << 20), budget))

    x2 = x.reshape(rows, D)        # free reshape; no pad, no trailing slice

    out = pl.pallas_call(
        prenorm_linear_kernel,
        out_shape=jax.ShapeDtypeStruct((rows, Dout), x.dtype),
        grid_spec=pltpu.PrefetchScalarGridSpec(
            num_scalar_prefetch=0,
            grid=grid,
            in_specs=[
                pl.BlockSpec((rm, D), lambda i, j: (i, 0)),    # rows (full D)
                pl.BlockSpec((D, tn), lambda i, j: (0, j)),    # folded W tile
                pl.BlockSpec((1, tn), lambda i, j: (0, j)),    # folded bias
            ],
            out_specs=pl.BlockSpec((rm, tn), lambda i, j: (i, j)),
            scratch_shapes=[pltpu.VMEM((rm, D), compute_dtype)],
        ),
        compiler_params=pltpu.CompilerParams(
            dimension_semantics=("parallel", "arbitrary"),
            vmem_limit_bytes=vmem_limit),
    )(x2, w_f, b_f)

    return out.reshape(B, N, Dout)


def prenorm_ref(x, gamma, beta, w, wb):
    xf = x.astype(jnp.float32)
    mean = jnp.mean(xf, axis=-1, keepdims=True)
    var = jnp.mean((xf - mean) ** 2, axis=-1, keepdims=True)
    xn = (xf - mean) / jnp.sqrt(var + EPS)
    y = xn * gamma + beta
    return (y @ w + wb).astype(x.dtype)


if __name__ == "__main__":
    B, N, D = 2, 8, 32
    Dout = D

    key = jax.random.PRNGKey(0)
    kx, kg, kb, kw, kwb = jax.random.split(key, 5)

    x = jax.random.normal(kx, (B, N, D), dtype=jnp.float32)
    # Deterministic parameter init (synthetic — not a checkpoint load).
    gamma = 1.0 + 0.02 * jax.random.normal(kg, (D,), dtype=jnp.float32)
    beta = 0.02 * jax.random.normal(kb, (D,), dtype=jnp.float32)
    w = jax.random.normal(kw, (D, Dout), dtype=jnp.float32) / jnp.sqrt(D)
    wb = 0.02 * jax.random.normal(kwb, (Dout,), dtype=jnp.float32)

    ref = prenorm_ref(x, gamma, beta, w, wb)

    # f32-operand path: tight check against the PyTorch-semantics reference.
    out_f32 = jax.block_until_ready(
        prenorm_linear(x, gamma, beta, w, wb, compute_dtype=jnp.float32))
    assert out_f32.shape == (B, N, Dout)
    assert jnp.allclose(out_f32, ref, atol=1e-4, rtol=1e-4), "f32 path mismatch"

    # bf16-operand matmul (default fast path, f32 accumulate): looser tolerance.
    out = jax.block_until_ready(prenorm_linear(x, gamma, beta, w, wb))
    assert out.shape == (B, N, Dout)
    assert jnp.allclose(out, ref, atol=3e-2, rtol=3e-2), "bf16 path mismatch"

    print("KERNEL_OK")
</pallas_src>

<mosaic_0001>
module attributes {stable_mosaic.version = 11 : i64} {
  func.func @prenorm_linear_kernel(%arg0: i32, %arg1: i32, %arg2: memref<16x32xf32, #tpu.memory_space<vmem>>, %arg3: memref<32x32xf32, #tpu.memory_space<vmem>>, %arg4: memref<1x32xf32, #tpu.memory_space<vmem>>, %arg5: memref<16x32xf32, #tpu.memory_space<vmem>>, %arg6: memref<16x32xf32, #tpu.memory_space<vmem>>) attributes {dimension_semantics = [#tpu.dimension_semantics<parallel>, #tpu.dimension_semantics<arbitrary>], iteration_bounds = array<i64: 1, 1>, scalar_prefetch = 0 : i64, scratch_operands = 1 : i64, tpu.core_type = #tpu.core_type<tc>, window_params = [{transform_indices = @transform_0, window_bounds = array<i64: 16, 32>}, {transform_indices = @transform_1, window_bounds = array<i64: 32, 32>}, {transform_indices = @transform_2, window_bounds = array<i64: 1, 32>}, {transform_indices = @transform_3, window_bounds = array<i64: 16, 32>}]} {
    %c0_i32 = arith.constant 0 : i32
    %0 = arith.cmpi eq, %arg1, %c0_i32 : i32
    %1 = arith.extui %0 : i1 to i32
    %c0_i32_0 = arith.constant 0 : i32
    %2 = arith.cmpi ne, %1, %c0_i32_0 : i32
    scf.if %2 {
      %c0_8 = arith.constant 0 : index
      %c0_9 = arith.constant 0 : index
      %10 = vector.load %arg2[%c0_8, %c0_9] : memref<16x32xf32, #tpu.memory_space<vmem>>, vector<16x32xf32>
      %cst_10 = arith.constant dense<0.000000e+00> : vector<16xf32>
      %11 = vector.multi_reduction <add>, %10, %cst_10 [1] : vector<16x32xf32> to vector<16xf32>
      %12 = vector.shape_cast %11 : vector<16xf32> to vector<16x1xf32>
      %cst_11 = arith.constant 3.200000e+01 : f32
      %13 = vector.broadcast %cst_11 : f32 to vector<16x1xf32>
      %14 = arith.divf %12, %13 : vector<16x1xf32>
      %15 = arith.mulf %10, %10 : vector<16x32xf32>
      %cst_12 = arith.constant dense<0.000000e+00> : vector<16xf32>
      %16 = vector.multi_reduction <add>, %15, %cst_12 [1] : vector<16x32xf32> to vector<16xf32>
      %17 = vector.shape_cast %16 : vector<16xf32> to vector<16x1xf32>
      %cst_13 = arith.constant 3.200000e+01 : f32
      %18 = vector.broadcast %cst_13 : f32 to vector<16x1xf32>
      %19 = arith.divf %17, %18 : vector<16x1xf32>
      %20 = arith.mulf %14, %14 : vector<16x1xf32>
      %21 = arith.subf %19, %20 : vector<16x1xf32>
      %cst_14 = arith.constant 9.99999974E-6 : f32
      %22 = vector.broadcast %cst_14 : f32 to vector<16x1xf32>
      %23 = arith.addf %21, %22 : vector<16x1xf32>
      %24 = math.rsqrt %23 : vector<16x1xf32>
      %25 = vector.broadcast %14 : vector<16x1xf32> to vector<16x32xf32>
      %26 = arith.subf %10, %25 : vector<16x32xf32>
      %27 = vector.broadcast %24 : vector<16x1xf32> to vector<16x32xf32>
      %28 = arith.mulf %26, %27 : vector<16x32xf32>
      %c0_15 = arith.constant 0 : index
      %c0_16 = arith.constant 0 : index
      %29 = vector.load %arg6[%c0_15, %c0_16] : memref<16x32xf32, #tpu.memory_space<vmem>>, vector<16x32xf32>
      tpu.vector_store %arg6[%c0_15, %c0_16], %28 {strides = array<i32>} : memref<16x32xf32, #tpu.memory_space<vmem>>, vector<16x32xf32>,
    } else {
    }
    %c0 = arith.constant 0 : index
    %c0_1 = arith.constant 0 : index
    %3 = vector.load %arg6[%c0, %c0_1] : memref<16x32xf32, #tpu.memory_space<vmem>>, vector<16x32xf32>
    %c0_2 = arith.constant 0 : index
    %c0_3 = arith.constant 0 : index
    %4 = vector.load %arg3[%c0_2, %c0_3] : memref<32x32xf32, #tpu.memory_space<vmem>>, vector<32x32xf32>
    %cst = arith.constant dense<0.000000e+00> : vector<16x32xf32>
    %5 = tpu.matmul %3, %4, %cst {dimension_numbers = #tpu.dot_dimension_numbers<[1], [0], [0], [1], [0, 0, 1, 1], [], []>} : vector<16x32xf32>, vector<32x32xf32>, vector<16x32xf32> -> vector<16x32xf32>
    %c0_4 = arith.constant 0 : index
    %c0_5 = arith.constant 0 : index
    %6 = vector.load %arg4[%c0_4, %c0_5] : memref<1x32xf32, #tpu.memory_space<vmem>>, vector<1x32xf32>
    %7 = vector.broadcast %6 : vector<1x32xf32> to vector<16x32xf32>
    %8 = arith.addf %5, %7 : vector<16x32xf32>
    %c0_6 = arith.constant 0 : index
    %c0_7 = arith.constant 0 : index
    %9 = vector.load %arg5[%c0_6, %c0_7] : memref<16x32xf32, #tpu.memory_space<vmem>>, vector<16x32xf32>
    tpu.vector_store %arg5[%c0_6, %c0_7], %8 {strides = array<i32>} : memref<16x32xf32, #tpu.memory_space<vmem>>, vector<16x32xf32>,
    return
  }
  func.func @transform_0(%arg0: i32, %arg1: i32) -> (i32, i32) {
    %c0_i32 = arith.constant 0 : i32
    %c0_i32_0 = arith.constant 0 : i32
    return %arg0, %c0_i32 : i32, i32
  }
  func.func @transform_1(%arg0: i32, %arg1: i32) -> (i32, i32) {
    %c0_i32 = arith.constant 0 : i32
    %c0_i32_0 = arith.constant 0 : i32
    return %c0_i32, %arg1 : i32, i32
  }
  func.func @transform_2(%arg0: i32, %arg1: i32) -> (i32, i32) {
    %c0_i32 = arith.constant 0 : i32
    %c0_i32_0 = arith.constant 0 : i32
    return %c0_i32, %arg1 : i32, i32
  }
  func.func @transform_3(%arg0: i32, %arg1: i32) -> (i32, i32) {
    %c0_i32 = arith.constant 0 : i32
    return %arg0, %arg1 : i32, i32
  }
}

</mosaic_0001>

<llo_original>
// kernel: tpu_custom_call.1
$region0: #{tpu_custom_call.1}
  #allocation0 [shape = 'u32[]', space=smem, size = 0x4, offset = 0x4, fixed_abs, tag = 'smem constant byte address 0x4 - core index']
  #allocation1 [shape = 'u32[144,128]{1,0:T(1,128)}', space=vmem, size = 0x12000, scoped, tag = 'internal scratch']
  #allocation2 [shape = 'f32[16,32]{1,0:T(8,128)}', space=vmem, size = 0x2000, scoped, tag = 'scratch operand']
  %s0 = inlined_call_operand.hbm [shape: f32[16,32], index: 0, kind: input, shape index: {}]
  %s1 = inlined_call_operand.hbm [shape: f32[32,32], index: 1, kind: input, shape index: {}]
  %s2 = inlined_call_operand.vmem [shape: f32[1,32], index: 2, kind: input, shape index: {}]
  %s3 = inlined_call_operand.hbm [shape: f32[16,32], index: 3, kind: output, shape index: {}]
  %s4 = sld [smem:[#allocation0]]
  $region34: #{tpu_custom_call.1} parent=0
    _
  %s6 = ssub.s32 1, %s4
  %s7 = scalar_select 0, %s6, %s4
  $region1: #{tpu_custom_call.1} parent=0
    #allocation3 [shape = 'u8[8192]{0}', space=vmem, size = 0x2000, scoped, tag = 'input window, operand 0, single buffered']
    #allocation4 [shape = 's32[1]{0}', space=sflag, size = 0x4, scoped, tag = 'scoped memory for tpu_custom_call.1']
    #allocation5 [shape = 's32[1]{0}', space=sflag, size = 0x4, scoped, tag = 'scoped memory for tpu_custom_call.1']
    #allocation6 [shape = 'u8[16384]{0}', space=vmem, size = 0x4000, scoped, tag = 'input window, operand 1, single buffered']
    #allocation7 [shape = 's32[1]{0}', space=sflag, size = 0x4, scoped, tag = 'scoped memory for tpu_custom_call.1']
    #allocation8 [shape = 'u8[8192]{0}', space=vmem, size = 0x2000, scoped, tag = 'output window, operand 0, single buffered']
    %8 = vsyncpa [#allocation4], 0
    %9 = vsyncpa [#allocation7], 0
    %10 = vsyncpa [#allocation5], 0
    // Predicated region
    $region2: #{tpu_custom_call.1} parent=1 // pred_check
      _
    $region3: #{tpu_custom_call.1} parent=1 // pred_check_branch
      %12 = sbr.rel (0) target = $region5
    $region4: #{tpu_custom_call.1} parent=1 // pred_region
      %s14 = ssub.s32 256, 256
      %15 = vsyncadd [#allocation4], %s14
      %s16 = sshll.u32 [#allocation3], 4
      %s17 = int_to_ptr.vmem [resolvable:$true] %s16
      %22 = dma.hbm_to_vmem [thread:$0]  %s0, 256, %s17, [#allocation4], 128, 128, 8
    $region5: #{tpu_custom_call.1} parent=1 // pred_fallthru
      _
    // Predicated region
    $region6: #{tpu_custom_call.1} parent=1 // pred_check
      _
    $region7: #{tpu_custom_call.1} parent=1 // pred_check_branch
      %24 = sbr.rel (0) target = $region9
    $region8: #{tpu_custom_call.1} parent=1 // pred_region
      %s26 = ssub.s32 512, 512
      %27 = vsyncadd [#allocation7], %s26
      %s28 = sshll.u32 [#allocation6], 4
      %s29 = int_to_ptr.vmem [resolvable:$true] %s28
      %34 = dma.hbm_to_vmem [thread:$0]  %s1, 512, %s29, [#allocation7], 128, 128, 8
    $region9: #{tpu_custom_call.1} parent=1 // pred_fallthru
      _
    // Predicated region
    $region10: #{tpu_custom_call.1} parent=1 // pred_check
      _
    $region11: #{tpu_custom_call.1} parent=1 // pred_check_branch
      %36 = sbr.rel (0) target = $region13
    $region12: #{tpu_custom_call.1} parent=1 // pred_region
      _
    $region13: #{tpu_custom_call.1} parent=1 // pred_fallthru
      _
    // Predicated region
    $region14: #{tpu_custom_call.1} parent=1 // pred_check
      _
    $region15: #{tpu_custom_call.1} parent=1 // pred_check_branch
      %38 = sbr.rel (0) target = $region17
    $region16: #{tpu_custom_call.1} parent=1 // pred_region
      %39 = dma.done [#allocation4], 256
    $region17: #{tpu_custom_call.1} parent=1 // pred_fallthru
      _
    // Predicated region
    $region18: #{tpu_custom_call.1} parent=1 // pred_check
      _
    $region19: #{tpu_custom_call.1} parent=1 // pred_check_branch
      %41 = sbr.rel (0) target = $region21
    $region20: #{tpu_custom_call.1} parent=1 // pred_region
      %42 = dma.done [#allocation7], 512
    $region21: #{tpu_custom_call.1} parent=1 // pred_fallthru
      _
    %p43 = scmp.eq.s32.totalorder 0, 0
    // Predicated region
    $region22: #{tpu_custom_call.1} parent=1 // pred_check
      %p44 = pneg %p43
    $region23: #{tpu_custom_call.1} parent=1 // pred_check_branch
      %46 = sbr.rel (%p44) target = $region25
    $region24: #{tpu_custom_call.1} parent=1 // pred_region
      %v47 = vld [vmem:[#allocation3] sm:$0xff]
      %v48 = vld [vmem:[#allocation3 + $0x8] sm:$0xff]
      %vm49 = vcmask 261120
      %v50 = vsel %vm49, %v47, 0.0
      %51 = vadd.xlane.f32.xlu0 %v50
      %v52 = vpop.xlane.xlu0 %51
      %v53 = vsel %vm49, %v48, 0.0
      %54 = vadd.xlane.f32.xlu0 %v53
      %v55 = vpop.xlane.xlu0 %54
      %v56 = vrcp.pop 32.0
      %v57 = vmul.f32 %v52, %v56
      %v58 = vmul.f32 %v55, %v56
      %v59 = vmul.f32 %v47, %v47
      %v60 = vmul.f32 %v48, %v48
      %v61 = vsel %vm49, %v59, 0.0
      %62 = vadd.xlane.f32.xlu0 %v61
      %v63 = vpop.xlane.xlu0 %62
      %v64 = vsel %vm49, %v60, 0.0
      %65 = vadd.xlane.f32.xlu0 %v64
      %v66 = vpop.xlane.xlu0 %65
      %v67 = vmul.f32 %v63, %v56
      %v68 = vmul.f32 %v66, %v56
      %v69 = vmul.f32 %v57, %v57
      %v70 = vmul.f32 %v58, %v58
      %v71 = vsub.f32 %v67, %v69
      %v72 = vsub.f32 %v68, %v70
      %v73 = vadd.f32 %v71, 1e-05
      %v74 = vadd.f32 %v72, 1e-05
      %v75 = vrsqrt.pop %v73
      %v76 = vrsqrt.pop %v74
      %v77 = vsub.f32 %v47, %v57
      %v78 = vsub.f32 %v48, %v58
      %v79 = vmul.f32 %v77, %v75
      %v80 = vmul.f32 %v78, %v76
      %81 = vst.msk [vmem:[#allocation2] sm:$0xff] %vm49, %v79
      %82 = vst.msk [vmem:[#allocation2 + $0x8] sm:$0xff] %vm49, %v80
    $region25: #{tpu_custom_call.1} parent=1 // pred_fallthru
      _
    %v83 = vld [vmem:[#allocation2] sm:$0xff]
    %v84 = vld [vmem:[#allocation2 + $0x8] sm:$0xff]
    %v85 = vld [vmem:[#allocation6] sm:$0xff]
    %v86 = vld [vmem:[#allocation6 + $0x8] sm:$0xff]
    %v87 = vld [vmem:[#allocation6 + $0x10] sm:$0xff]
    %v88 = vld [vmem:[#allocation6 + $0x18] sm:$0xff]
    %v89 = vld [vmem:[%s2] sm:$0x1]
    %v91 = vlaneseq
    %v92 = vshrl.u32 %v91, 7
    %v93 = vsub.s32 0, %v92
    %v94 = vrot.slane %v89, %v93
    %vm96 = vcmask 261120
    %v98 = vsel %vm96, %v83, 0
    %v101 = vsel %vm96, %v84, 0
    %103 = vmatprep.subr.mxu0 0.0
    %104 = vmatpush1.msra.mxu0 0.0
    %105 = vmatprep.subr.mxu0 0.0
    %106 = vmatpush1.msra.mxu0 0.0
    %107 = vmatprep.subr.mxu0 0.0
    %108 = vmatpush1.msra.mxu0 0.0
    %109 = vmatprep.subr.mxu0 0.0
    %110 = vmatpush1.msra.mxu0 0.0
    %111 = vmatprep.subr.mxu0 0.0
    %112 = vmatpush1.msra.mxu0 0.0
    %113 = vmatprep.subr.mxu0 0.0
    %114 = vmatpush1.msra.mxu0 0.0
    %115 = vmatprep.subr.mxu0 0.0
    %116 = vmatpush1.msra.mxu0 0.0
    %117 = vmatprep.subr.mxu0 0.0
    %118 = vmatpush1.msra.mxu0 0.0
    %119 = vmatprep.subr.mxu0 0.0
    %120 = vmatpush1.msra.mxu0 0.0
    %121 = vmatprep.subr.mxu0 0.0
    %122 = vmatpush1.msra.mxu0 0.0
    %123 = vmatprep.subr.mxu0 0.0
    %124 = vmatpush1.msra.mxu0 0.0
    %125 = vmatprep.subr.mxu0 0.0
    %126 = vmatpush1.msra.mxu0 0.0
    %127 = vmatprep.subr.mxu0 0.0
    %128 = vmatpush1.msra.mxu0 %v88
    %129 = vmatprep.subr.mxu0 0.0
    %130 = vmatpush1.msra.mxu0 %v87
    %131 = vmatprep.subr.mxu0 0.0
    %132 = vmatpush1.msra.mxu0 %v86
    %133 = vmatprep.subr.mxu0 0.0
    %134 = vmatpush1.msra.mxu0 %v85
    %135 = vmatprep.subr.mxu0 0.0
    %136 = vmatpush2.msra.mxu0 0.0
    %137 = vmatprep.subr.mxu0 0.0
    %138 = vmatpush2.msra.mxu0 0.0
    %139 = vmatprep.subr.mxu0 0.0
    %140 = vmatpush2.msra.mxu0 0.0
    %141 = vmatprep.subr.mxu0 0.0
    %142 = vmatpush2.msra.mxu0 0.0
    %143 = vmatprep.subr.mxu0 0.0
    %144 = vmatpush2.msra.mxu0 0.0
    %145 = vmatprep.subr.mxu0 0.0
    %146 = vmatpush2.msra.mxu0 0.0
    %147 = vmatprep.subr.mxu0 0.0
    %148 = vmatpush2.msra.mxu0 0.0
    %149 = vmatprep.subr.mxu0 0.0
    %150 = vmatpush2.msra.mxu0 0.0
    %151 = vmatprep.subr.mxu0 0.0
    %152 = vmatpush2.msra.mxu0 0.0
    %153 = vmatprep.subr.mxu0 0.0
    %154 = vmatpush2.msra.mxu0 0.0
    %155 = vmatprep.subr.mxu0 0.0
    %156 = vmatpush2.msra.mxu0 0.0
    %157 = vmatprep.subr.mxu0 0.0
    %158 = vmatpush2.msra.mxu0 0.0
    %159 = vmatprep.subr.mxu0 0.0
    %160 = vmatpush2.msra.mxu0 0.0
    %161 = vmatprep.subr.mxu0 0.0
    %162 = vmatpush2.msra.mxu0 0.0
    %163 = vmatprep.subr.mxu0 0.0
    %164 = vmatpush2.msra.mxu0 0.0
    %165 = vmatprep.subr.mxu0 0.0
    %166 = vmatpush2.msra.mxu0 0.0
    %167 = vmatprep.mubr.f32.mxu0 0.0
    %168 = vmatmul.mubr.f32.gmra.mxu0 %v98
    %v169 = vpop.f32.mrf.mxu0
    %v170 = vadd.f32 %v94, %v169
    %v171 = vpop.f32.mrf.mxu0
    %172 = vmatprep.mubr.f32.mxu0 0.0
    %173 = vmatmul.mubr.f32.gmra.mxu0 %v101
    %v174 = vpop.f32.mrf.mxu0
    %v175 = vadd.f32 %v94, %v174
    %v176 = vpop.f32.mrf.mxu0
    %177 = vdwg.mxu0
    %178 = vst.msk [vmem:[#allocation8] sm:$0xff] %vm96, %v170
    %179 = vst.msk [vmem:[#allocation8 + $0x8] sm:$0xff] %vm96, %v175
    // Predicated region
    $region26: #{tpu_custom_call.1} parent=1 // pred_check
      _
    $region27: #{tpu_custom_call.1} parent=1 // pred_check_branch
      %181 = sbr.rel (0) target = $region29
    $region28: #{tpu_custom_call.1} parent=1 // pred_region
      %s183 = ssub.s32 256, 256
      %184 = vsyncadd [#allocation5], %s183
      %s185 = sshll.u32 [#allocation8], 4
      %s186 = int_to_ptr.vmem [resolvable:$true] %s185
      %191 = dma.vmem_to_hbm [thread:$0]  %s186, 256, %s3, [#allocation5], 128, 128, 8
    $region29: #{tpu_custom_call.1} parent=1 // pred_fallthru
      _
    // Predicated region
    $region30: #{tpu_custom_call.1} parent=1 // pred_check
      _
    $region31: #{tpu_custom_call.1} parent=1 // pred_check_branch
      %193 = sbr.rel (0) target = $region33
    $region32: #{tpu_custom_call.1} parent=1 // pred_region
      %194 = dma.done [#allocation5], 256
    $region33: #{tpu_custom_call.1} parent=1 // pred_fallthru
      _
    %195 = vsyncpa [#allocation4], 1
    %196 = vsyncpa [#allocation7], 1
    %197 = vsyncpa [#allocation5], 1

</llo_original>
